<compile_context>
chip_gen: v5e
topology: v5e:2x2
jax: 0.10.0
libtpu: 0.0.40
codegen_flags: <defaults>
</compile_context>

<pallas_src>
import jax
import jax.numpy as jnp
from jax.experimental import pallas as pl
from jax.experimental.pallas import tpu as pltpu


_LANE = 128
_SUBLANE = 8
# Per-block byte budget.  Pallas double-buffers both the input and the output
# block, so the live VMEM footprint is ~4x this (~16 MiB), comfortably under
# the 24 MiB scoped-VMEM limit pinned below on every generation.
_BLOCK_BYTE_BUDGET = 4 * 1024 * 1024
_VMEM_LIMIT_BYTES = 24 << 20


def _identity_kernel(x_ref, o_ref):
    # The base-class forward performs no computation; this is the identity
    # pass-through of the state tile resident in VMEM.
    o_ref[...] = x_ref[...]


def _lane_dense_view(xs):
    """Return a 2-D view whose last dim is a multiple of 128 when possible."""
    batch, feat = xs.shape
    if feat % _LANE == 0:
        return xs
    total = batch * feat
    for lanes in (1024, 512, 256, _LANE):
        if total % lanes == 0:
            return xs.reshape(total // lanes, lanes)
    # Ragged fallback: keep the original layout.  A full-extent (or masked
    # edge) block is still correct, just uses masked stores on the last dim.
    return xs


def _pick_tile_rows(rows, row_bytes):
    """Byte-budgeted row tile: multiple of 8, preferably dividing `rows`."""
    if rows <= _SUBLANE:
        return rows  # full-array block (block_shape == array shape is allowed)

    max_rows = _BLOCK_BYTE_BUDGET // max(row_bytes, 1)
    max_rows = max(_SUBLANE, max_rows - (max_rows % _SUBLANE))
    tile = min(rows, max_rows)

    if tile == rows:
        # Whole array fits in one block.  For large arrays split into >= 2
        # tiles so the "parallel" grid axis can shard across v7x's two
        # TensorCores; tiny arrays stay single-block (step overhead dominates).
        if rows >= 2 * _SUBLANE and rows * row_bytes > (2 << 20):
            half = (rows // 2) - ((rows // 2) % _SUBLANE)
            tile = max(_SUBLANE, half)
        else:
            return tile

    # Prefer a tile that divides `rows` exactly: avoids a masked edge block
    # over the donated (aliased) HBM buffer.  Bounded scan keeps this cheap.
    cand = tile
    for _ in range(64):
        if cand < _SUBLANE:
            break
        if rows % cand == 0:
            return cand
        cand -= _SUBLANE
    return tile


def _pallas_identity_copy(xs):
    """Tiled, double-buffered HBM->VMEM->HBM identity copy of `xs`."""
    orig_shape = xs.shape
    slab = _lane_dense_view(xs)
    rows, lanes = slab.shape
    itemsize = slab.dtype.itemsize

    tile_rows = _pick_tile_rows(rows, lanes * itemsize)
    grid = (pl.cdiv(rows, tile_rows),)

    bytes_accessed = 2 * rows * lanes * itemsize  # read + write

    out = pl.pallas_call(
        _identity_kernel,
        out_shape=jax.ShapeDtypeStruct((rows, lanes), slab.dtype),
        grid=grid,
        in_specs=[pl.BlockSpec((tile_rows, lanes), lambda i: (i, 0))],
        out_specs=pl.BlockSpec((tile_rows, lanes), lambda i: (i, 0)),
        # Pure per-tile identity: each tile writes back exactly the bytes it
        # read, so donating the input HBM buffer to the output is safe.
        # TODO(synk): remove this alias if the kernel ever becomes
        # non-identity (pipelined writeback would create a RAW hazard).
        input_output_aliases={0: 0},
        cost_estimate=pl.CostEstimate(
            flops=0, transcendentals=0, bytes_accessed=bytes_accessed
        ),
        compiler_params=pltpu.CompilerParams(
            dimension_semantics=("parallel",),
            vmem_limit_bytes=_VMEM_LIMIT_BYTES,
        ),
    )(slab)

    if out.shape != orig_shape:
        out = out.reshape(orig_shape)
    return out


def policy_forward(xs: jax.Array, *, force_pallas_copy: bool = False) -> jax.Array:
    """Pallas equivalent of Policy.forward for the abstract base class.

    xs: float32[batch, features]  (batch -> sublanes, features -> lanes)

    The base class defines no transformation, so by default this returns the
    state untouched (zero HBM traffic -- the fastest correct implementation).
    With force_pallas_copy=True the state is routed through a tiled Pallas
    identity kernel (kept as the template for a future non-trivial forward).
    """
    if not force_pallas_copy:
        return xs
    return _pallas_identity_copy(xs)


if __name__ == "__main__":
    key = jax.random.PRNGKey(0)

    # Small state batch consistent with a REINFORCE policy input:
    # batch=8 states, feature dim=128 (lane-aligned).
    xs = jax.random.normal(key, (8, 128), dtype=jnp.float32)
    xs_host = jax.device_get(xs)  # snapshot before the aliased pallas_call

    # Fast path (default): the abstract forward is a no-op on the state.
    fast = policy_forward(xs)
    assert fast is xs

    # Pallas path: exercise the tiled identity kernel.
    out = policy_forward(xs, force_pallas_copy=True)
    out = jax.block_until_ready(out)
    assert out.shape == xs_host.shape and out.dtype == xs_host.dtype
    assert bool(jnp.allclose(out, xs_host))

    # Second shape exercises the lane-dense reshape path (feat=96 is not a
    # multiple of 128; 16*96 flattens to a (3, 512) lane-dense slab).
    key2 = jax.random.PRNGKey(0)
    ys = jax.random.normal(key2, (16, 96), dtype=jnp.float32)
    ys_host = jax.device_get(ys)
    out2 = policy_forward(ys, force_pallas_copy=True)
    out2 = jax.block_until_ready(out2)
    assert out2.shape == ys_host.shape and out2.dtype == ys_host.dtype
    assert bool(jnp.allclose(out2, ys_host))

    print("KERNEL_OK")
</pallas_src>

<mosaic_0001>
module attributes {stable_mosaic.version = 11 : i64} {
  func.func @_identity_kernel(%arg0: i32, %arg1: memref<8x128xf32, #tpu.memory_space<vmem>>, %arg2: memref<8x128xf32, #tpu.memory_space<vmem>>) attributes {dimension_semantics = [#tpu.dimension_semantics<parallel>], iteration_bounds = array<i64: 1>, scalar_prefetch = 0 : i64, scratch_operands = 0 : i64, tpu.core_type = #tpu.core_type<tc>, window_params = [{transform_indices = @transform_0, window_bounds = array<i64: 8, 128>}, {transform_indices = @transform_1, window_bounds = array<i64: 8, 128>}]} {
    %c0 = arith.constant 0 : index
    %c0_0 = arith.constant 0 : index
    %0 = vector.load %arg1[%c0, %c0_0] : memref<8x128xf32, #tpu.memory_space<vmem>>, vector<8x128xf32>
    %c0_1 = arith.constant 0 : index
    %c0_2 = arith.constant 0 : index
    %1 = vector.load %arg2[%c0_1, %c0_2] : memref<8x128xf32, #tpu.memory_space<vmem>>, vector<8x128xf32>
    tpu.vector_store %arg2[%c0_1, %c0_2], %0 {strides = array<i32>} : memref<8x128xf32, #tpu.memory_space<vmem>>, vector<8x128xf32>,
    return
  }
  func.func @transform_0(%arg0: i32) -> (i32, i32) {
    %c0_i32 = arith.constant 0 : i32
    %c0_i32_0 = arith.constant 0 : i32
    return %arg0, %c0_i32 : i32, i32
  }
  func.func @transform_1(%arg0: i32) -> (i32, i32) {
    %c0_i32 = arith.constant 0 : i32
    %c0_i32_0 = arith.constant 0 : i32
    return %arg0, %c0_i32 : i32, i32
  }
}

</mosaic_0001>

<llo_original>
// kernel: tpu_custom_call.1
$region0: #{tpu_custom_call.1}
  #allocation0 [shape = 'u32[]', space=smem, size = 0x4, offset = 0x4, fixed_abs, tag = 'smem constant byte address 0x4 - core index']
  #allocation1 [shape = 'u32[72,128]{1,0:T(1,128)}', space=vmem, size = 0x9000, scoped, tag = 'internal scratch']
  %s0 = inlined_call_operand.hbm [shape: f32[8,128], index: 0, kind: input, shape index: {}, may-alias: {0,1}]
  %s1 = inlined_call_operand.hbm [shape: f32[8,128], index: 1, kind: output, shape index: {}, may-alias: {0,1}]
  %s2 = sld [smem:[#allocation0]]
  $region18: #{tpu_custom_call.1} parent=0
    _
  %s4 = ssub.s32 1, %s2
  %s5 = scalar_select 0, %s4, %s2
  $region1: #{tpu_custom_call.1} parent=0
    #allocation2 [shape = 'u8[4096]{0}', space=vmem, size = 0x1000, scoped, tag = 'input window, operand 0, single buffered']
    #allocation3 [shape = 's32[1]{0}', space=sflag, size = 0x4, scoped, tag = 'scoped memory for tpu_custom_call.1']
    #allocation4 [shape = 's32[1]{0}', space=sflag, size = 0x4, scoped, tag = 'scoped memory for tpu_custom_call.1']
    #allocation5 [shape = 'u8[4096]{0}', space=vmem, size = 0x1000, scoped, tag = 'output window, operand 0, single buffered']
    %6 = vsyncpa [#allocation3], 0
    %7 = vsyncpa [#allocation4], 0
    // Predicated region
    $region2: #{tpu_custom_call.1} parent=1 // pred_check
      _
    $region3: #{tpu_custom_call.1} parent=1 // pred_check_branch
      %9 = sbr.rel (0) target = $region5
    $region4: #{tpu_custom_call.1} parent=1 // pred_region
      %11 = vsyncadd [#allocation3], 0
      %s13 = sshll.u32 %s0, 4
      %s14 = int_to_ptr.hbm [resolvable:$true] %s13
      %s15 = sshll.u32 [#allocation2], 4
      %s16 = int_to_ptr.vmem [resolvable:$true] %s15
      %18 = dma.hbm_to_vmem [thread:$0]  %s14, 128, %s16, [#allocation3]
    $region5: #{tpu_custom_call.1} parent=1 // pred_fallthru
      _
    // Predicated region
    $region6: #{tpu_custom_call.1} parent=1 // pred_check
      _
    $region7: #{tpu_custom_call.1} parent=1 // pred_check_branch
      %20 = sbr.rel (0) target = $region9
    $region8: #{tpu_custom_call.1} parent=1 // pred_region
      %22 = dma.done [#allocation3], 128
    $region9: #{tpu_custom_call.1} parent=1 // pred_fallthru
      _
    %v23 = vld [vmem:[#allocation2] sm:$0xff]
    %24 = vst [vmem:[#allocation5] sm:$0xff] %v23
    // Predicated region
    $region10: #{tpu_custom_call.1} parent=1 // pred_check
      _
    $region11: #{tpu_custom_call.1} parent=1 // pred_check_branch
      %26 = sbr.rel (0) target = $region13
    $region12: #{tpu_custom_call.1} parent=1 // pred_region
      %28 = vsyncadd [#allocation4], 0
      %s30 = sshll.u32 [#allocation5], 4
      %s31 = int_to_ptr.vmem [resolvable:$true] %s30
      %s32 = sshll.u32 %s1, 4
      %s33 = int_to_ptr.hbm [resolvable:$true] %s32
      %35 = dma.vmem_to_hbm [thread:$0]  %s31, 128, %s33, [#allocation4]
    $region13: #{tpu_custom_call.1} parent=1 // pred_fallthru
      _
    // Predicated region
    $region14: #{tpu_custom_call.1} parent=1 // pred_check
      _
    $region15: #{tpu_custom_call.1} parent=1 // pred_check_branch
      %37 = sbr.rel (0) target = $region17
    $region16: #{tpu_custom_call.1} parent=1 // pred_region
      %39 = dma.done [#allocation4], 128
    $region17: #{tpu_custom_call.1} parent=1 // pred_fallthru
      _
    %40 = vsyncpa [#allocation3], 1
    %41 = vsyncpa [#allocation4], 1

</llo_original>
